<compile_context>
chip_gen: v5e
topology: v5e:2x2
jax: 0.10.0
libtpu: 0.0.40
codegen_flags: <defaults>
</compile_context>

<pallas_src>
import math

import jax
import jax.numpy as jnp
from jax.experimental import pallas as pl
from jax.experimental.pallas import tpu as pltpu

LANE = 128        # TPU lane width.
N_LAYERS = 7      # il + hidden1..5 + ol


def _gelu_exact(x):
    # Matches torch.nn.functional.gelu default (erf-based, not tanh approx).
    return 0.5 * x * (1.0 + jax.lax.erf(x * (1.0 / math.sqrt(2.0))))


def mlp_kernel(x_ref, w_ref, b_ref, o_ref):
    # x_ref: (TM, 128) f32   w_ref: (7, 128, 128) bf16 (block-diagonal)
    # b_ref: (8, 128) f32    o_ref: (TM, 128) f32
    h = x_ref[...]
    for layer in range(N_LAYERS):                 # static, fully unrolled
        w = w_ref[layer]                          # (128, 128) bf16, VMEM-resident
        b = b_ref[layer:layer + 1, :]             # (1, 128) f32
        h = jnp.dot(h.astype(jnp.bfloat16), w,    # bf16 x bf16 -> f32 acc on MXU
                    preferred_element_type=jnp.float32) + b
        if layer < N_LAYERS - 1:
            h = _gelu_exact(h)                    # exact erf-GELU, f32 on VPU
    o_ref[...] = h                                # lane-dense (TM, 128) store


# ------------------------------ packing helpers ------------------------------

def _round_up(x, m):
    return (x + m - 1) // m * m


def _slot_width(dims):
    """Smallest divisor of 128 that holds every layer's feature dim."""
    m = max(dims)
    for s in (8, 16, 32, 64, 128):
        if m <= s:
            return s
    raise ValueError("feature dims > 128 not supported by this kernel")


def pack_params(params, slot, pack):
    """params: list of 7 (w, b); w is (in, out), b is (1, out).

    Returns:
      w_stack (7,128,128) bf16: each 128x128 slab is `pack` copies of the
        zero-padded (slot,slot) weight block on the diagonal.
      b_stack (8,128) f32: zero-padded (slot,) bias tiled `pack` times.
    Padded rows/cols/lanes are exactly zero so packed samples never mix.
    """
    w_stack = jnp.zeros((N_LAYERS, LANE, LANE), jnp.float32)
    b_stack = jnp.zeros((8, LANE), jnp.float32)
    for i, (w, b) in enumerate(params):
        fi, fo = w.shape
        blk_w = jnp.zeros((slot, slot), jnp.float32).at[:fi, :fo].set(w)
        blk_b = jnp.zeros((slot,), jnp.float32).at[:fo].set(b.reshape(-1))
        for p in range(pack):
            lo = p * slot
            w_stack = w_stack.at[i, lo:lo + slot, lo:lo + slot].set(blk_w)
        b_stack = b_stack.at[i, :].set(jnp.tile(blk_b, pack))
    return w_stack.astype(jnp.bfloat16), b_stack


def mlp_forward(x, params, *, block_rows=1024):
    """x: (B, input_size) f32; params: list of 7 (w, b) with w (in, out)."""
    B, F = x.shape
    out_dim = params[-1][0].shape[1]

    dims = [F] + [w.shape[1] for w, _ in params]
    slot = _slot_width(dims)          # per-sample lane slot (32 for hidden=32)
    pack = LANE // slot               # samples packed per 128-lane row (4)

    w_stack, b_stack = pack_params(params, slot, pack)

    # Packed-row tiling: big tiles, but aim for >=2 grid steps so the
    # ("parallel",) axis can shard across v7x's two TensorCores.
    rows = _round_up(max(-(-B // pack), 1), 8)      # packed rows, 8-aligned
    half = _round_up(-(-rows // 2), 8)
    tm = max(8, min(block_rows, half))
    rows_p = _round_up(rows, tm)
    samples_p = rows_p * pack

    # Pack input: only pad to `slot` lanes (not 128) + trailing rows, then a
    # contiguous reshape folds `pack` samples into each 128-lane row.
    x = x.astype(jnp.float32)
    if F == slot and B == samples_p:
        x_packed = x.reshape(rows_p, LANE)          # pure reshape, zero pad traffic
    else:
        x_pad = jnp.zeros((samples_p, slot), jnp.float32).at[:B, :F].set(x)
        x_packed = x_pad.reshape(rows_p, LANE)

    grid = (rows_p // tm,)
    flops = 2 * rows_p * N_LAYERS * LANE * LANE
    bytes_accessed = (4 * x_packed.size + 2 * w_stack.size
                      + 4 * b_stack.size + 4 * rows_p * LANE)

    out_p = pl.pallas_call(
        mlp_kernel,
        out_shape=jax.ShapeDtypeStruct((rows_p, LANE), jnp.float32),
        grid=grid,
        in_specs=[
            pl.BlockSpec((tm, LANE), lambda i: (i, 0)),                 # x: tiled rows
            pl.BlockSpec((N_LAYERS, LANE, LANE), lambda i: (0, 0, 0)),  # weights: resident
            pl.BlockSpec((8, LANE), lambda i: (0, 0)),                  # biases: resident
        ],
        out_specs=pl.BlockSpec((tm, LANE), lambda i: (i, 0)),
        compiler_params=pltpu.CompilerParams(
            dimension_semantics=("parallel",),      # megacore sharding on v7x
            vmem_limit_bytes=32 << 20,
        ),
        cost_estimate=pl.CostEstimate(
            flops=flops,
            transcendentals=rows_p * LANE * (N_LAYERS - 1),
            bytes_accessed=bytes_accessed,
        ),
    )(x_packed, w_stack, b_stack)

    # Unpack: row r, slot p  ->  sample r*pack + p, lanes [0:out_dim].
    out = out_p.reshape(rows_p * pack, slot)
    return out[:B, :out_dim]


# ----------------------------- init / reference -----------------------------

def xavier_uniform(key, fan_in, fan_out):
    # torch.nn.init.xavier_uniform_: U(-a, a), a = sqrt(6 / (fan_in + fan_out))
    a = math.sqrt(6.0 / (fan_in + fan_out))
    return jax.random.uniform(key, (fan_in, fan_out), jnp.float32, -a, a)


def linear_bias(key, fan_in, fan_out):
    # torch Linear default bias init: U(-1/sqrt(fan_in), 1/sqrt(fan_in))
    bound = 1.0 / math.sqrt(fan_in)
    return jax.random.uniform(key, (1, fan_out), jnp.float32, -bound, bound)


def init_params(key, input_size, hidden, output_size):
    dims = [(input_size, hidden)] + [(hidden, hidden)] * 5 + [(hidden, output_size)]
    params = []
    for (fi, fo) in dims:
        key, kw, kb = jax.random.split(key, 3)
        params.append((xavier_uniform(kw, fi, fo), linear_bias(kb, fi, fo)))
    return params


def reference_forward(x, params, *, bf16_operands=False):
    h = x
    for i, (w, b) in enumerate(params):
        if bf16_operands:
            h = jnp.dot(h.astype(jnp.bfloat16), w.astype(jnp.bfloat16),
                        preferred_element_type=jnp.float32) + b
        else:
            h = jnp.dot(h, w, precision=jax.lax.Precision.HIGHEST) + b
        if i < len(params) - 1:
            h = jax.nn.gelu(h, approximate=False)
    return h


if __name__ == "__main__":
    key = jax.random.PRNGKey(0)
    kx, kp = jax.random.split(key)

    batch, input_size, hidden, output_size = 8, 32, 32, 16
    x = jax.random.normal(kx, (batch, input_size), jnp.float32)
    params = init_params(kp, input_size, hidden, output_size)

    out = mlp_forward(x, params)
    out = jax.block_until_ready(out)
    assert out.shape == (batch, output_size)

    # Tight check: same bf16-operand / f32-accumulation math as the kernel.
    ref_bf16 = reference_forward(x, params, bf16_operands=True)
    assert jnp.allclose(out, ref_bf16, atol=1e-4, rtol=1e-4), \
        f"bf16-ref max abs err = {float(jnp.max(jnp.abs(out - ref_bf16)))}"

    # Semantics check vs full-f32 torch-equivalent forward (bf16 MXU operands
    # were adopted per the perf review, so the tolerance is relaxed from 1e-4).
    ref_f32 = reference_forward(x, params)
    assert jnp.allclose(out, ref_f32, atol=5e-2, rtol=5e-2), \
        f"f32-ref max abs err = {float(jnp.max(jnp.abs(out - ref_f32)))}"

    print("KERNEL_OK")
</pallas_src>

<mosaic_0001>
module attributes {stable_mosaic.version = 11 : i64} {
  func.func @mlp_kernel(%arg0: i32, %arg1: memref<8x128xf32, #tpu.memory_space<vmem>>, %arg2: memref<7x128x128xbf16, #tpu.memory_space<vmem>>, %arg3: memref<8x128xf32, #tpu.memory_space<vmem>>, %arg4: memref<8x128xf32, #tpu.memory_space<vmem>>) attributes {dimension_semantics = [#tpu.dimension_semantics<parallel>], iteration_bounds = array<i64: 1>, scalar_prefetch = 0 : i64, scratch_operands = 0 : i64, tpu.core_type = #tpu.core_type<tc>, window_params = [{transform_indices = @transform_0, window_bounds = array<i64: 8, 128>}, {pipeline_mode = #tpu.pipeline_mode<synchronous>, transform_indices = @transform_1, window_bounds = array<i64: 7, 128, 128>}, {pipeline_mode = #tpu.pipeline_mode<synchronous>, transform_indices = @transform_2, window_bounds = array<i64: 8, 128>}, {transform_indices = @transform_3, window_bounds = array<i64: 8, 128>}]} {
    %c0 = arith.constant 0 : index
    %c0_0 = arith.constant 0 : index
    %0 = vector.load %arg1[%c0, %c0_0] : memref<8x128xf32, #tpu.memory_space<vmem>>, vector<8x128xf32>
    %c0_1 = arith.constant 0 : index
    %c0_2 = arith.constant 0 : index
    %c0_3 = arith.constant 0 : index
    %1 = vector.load %arg2[%c0_1, %c0_2, %c0_3] : memref<7x128x128xbf16, #tpu.memory_space<vmem>>, vector<1x128x128xbf16>
    %2 = vector.shape_cast %1 : vector<1x128x128xbf16> to vector<128x128xbf16>
    %c0_4 = arith.constant 0 : index
    %c0_5 = arith.constant 0 : index
    %3 = vector.load %arg3[%c0_4, %c0_5] : memref<8x128xf32, #tpu.memory_space<vmem>>, vector<1x128xf32>
    %4 = arith.truncf %0 : vector<8x128xf32> to vector<8x128xbf16>
    %cst = arith.constant dense<0.000000e+00> : vector<8x128xf32>
    %5 = tpu.matmul %4, %2, %cst {dimension_numbers = #tpu.dot_dimension_numbers<[1], [0], [0], [1], [0, 0, 1, 1], [], []>} : vector<8x128xbf16>, vector<128x128xbf16>, vector<8x128xf32> -> vector<8x128xf32>
    %6 = vector.broadcast %3 : vector<1x128xf32> to vector<8x128xf32>
    %7 = arith.addf %5, %6 : vector<8x128xf32>
    %cst_6 = arith.constant 5.000000e-01 : f32
    %8 = vector.broadcast %cst_6 : f32 to vector<8x128xf32>
    %9 = arith.mulf %8, %7 : vector<8x128xf32>
    %cst_7 = arith.constant 0.707106769 : f32
    %10 = vector.broadcast %cst_7 : f32 to vector<8x128xf32>
    %11 = arith.mulf %7, %10 : vector<8x128xf32>
    %12 = math.erf %11 : vector<8x128xf32>
    %cst_8 = arith.constant 1.000000e+00 : f32
    %13 = vector.broadcast %cst_8 : f32 to vector<8x128xf32>
    %14 = arith.addf %13, %12 : vector<8x128xf32>
    %15 = arith.mulf %9, %14 : vector<8x128xf32>
    %c1 = arith.constant 1 : index
    %c0_9 = arith.constant 0 : index
    %c0_10 = arith.constant 0 : index
    %16 = vector.load %arg2[%c1, %c0_9, %c0_10] : memref<7x128x128xbf16, #tpu.memory_space<vmem>>, vector<1x128x128xbf16>
    %17 = vector.shape_cast %16 : vector<1x128x128xbf16> to vector<128x128xbf16>
    %c1_11 = arith.constant 1 : index
    %c0_12 = arith.constant 0 : index
    %18 = vector.load %arg3[%c1_11, %c0_12] : memref<8x128xf32, #tpu.memory_space<vmem>>, vector<1x128xf32>
    %19 = arith.truncf %15 : vector<8x128xf32> to vector<8x128xbf16>
    %cst_13 = arith.constant dense<0.000000e+00> : vector<8x128xf32>
    %20 = tpu.matmul %19, %17, %cst_13 {dimension_numbers = #tpu.dot_dimension_numbers<[1], [0], [0], [1], [0, 0, 1, 1], [], []>} : vector<8x128xbf16>, vector<128x128xbf16>, vector<8x128xf32> -> vector<8x128xf32>
    %21 = vector.broadcast %18 : vector<1x128xf32> to vector<8x128xf32>
    %22 = arith.addf %20, %21 : vector<8x128xf32>
    %cst_14 = arith.constant 5.000000e-01 : f32
    %23 = vector.broadcast %cst_14 : f32 to vector<8x128xf32>
    %24 = arith.mulf %23, %22 : vector<8x128xf32>
    %cst_15 = arith.constant 0.707106769 : f32
    %25 = vector.broadcast %cst_15 : f32 to vector<8x128xf32>
    %26 = arith.mulf %22, %25 : vector<8x128xf32>
    %27 = math.erf %26 : vector<8x128xf32>
    %cst_16 = arith.constant 1.000000e+00 : f32
    %28 = vector.broadcast %cst_16 : f32 to vector<8x128xf32>
    %29 = arith.addf %28, %27 : vector<8x128xf32>
    %30 = arith.mulf %24, %29 : vector<8x128xf32>
    %c2 = arith.constant 2 : index
    %c0_17 = arith.constant 0 : index
    %c0_18 = arith.constant 0 : index
    %31 = vector.load %arg2[%c2, %c0_17, %c0_18] : memref<7x128x128xbf16, #tpu.memory_space<vmem>>, vector<1x128x128xbf16>
    %32 = vector.shape_cast %31 : vector<1x128x128xbf16> to vector<128x128xbf16>
    %c2_19 = arith.constant 2 : index
    %c0_20 = arith.constant 0 : index
    %33 = vector.load %arg3[%c2_19, %c0_20] : memref<8x128xf32, #tpu.memory_space<vmem>>, vector<1x128xf32>
    %34 = arith.truncf %30 : vector<8x128xf32> to vector<8x128xbf16>
    %cst_21 = arith.constant dense<0.000000e+00> : vector<8x128xf32>
    %35 = tpu.matmul %34, %32, %cst_21 {dimension_numbers = #tpu.dot_dimension_numbers<[1], [0], [0], [1], [0, 0, 1, 1], [], []>} : vector<8x128xbf16>, vector<128x128xbf16>, vector<8x128xf32> -> vector<8x128xf32>
    %36 = vector.broadcast %33 : vector<1x128xf32> to vector<8x128xf32>
    %37 = arith.addf %35, %36 : vector<8x128xf32>
    %cst_22 = arith.constant 5.000000e-01 : f32
    %38 = vector.broadcast %cst_22 : f32 to vector<8x128xf32>
    %39 = arith.mulf %38, %37 : vector<8x128xf32>
    %cst_23 = arith.constant 0.707106769 : f32
    %40 = vector.broadcast %cst_23 : f32 to vector<8x128xf32>
    %41 = arith.mulf %37, %40 : vector<8x128xf32>
    %42 = math.erf %41 : vector<8x128xf32>
    %cst_24 = arith.constant 1.000000e+00 : f32
    %43 = vector.broadcast %cst_24 : f32 to vector<8x128xf32>
    %44 = arith.addf %43, %42 : vector<8x128xf32>
    %45 = arith.mulf %39, %44 : vector<8x128xf32>
    %c3 = arith.constant 3 : index
    %c0_25 = arith.constant 0 : index
    %c0_26 = arith.constant 0 : index
    %46 = vector.load %arg2[%c3, %c0_25, %c0_26] : memref<7x128x128xbf16, #tpu.memory_space<vmem>>, vector<1x128x128xbf16>
    %47 = vector.shape_cast %46 : vector<1x128x128xbf16> to vector<128x128xbf16>
    %c3_27 = arith.constant 3 : index
    %c0_28 = arith.constant 0 : index
    %48 = vector.load %arg3[%c3_27, %c0_28] : memref<8x128xf32, #tpu.memory_space<vmem>>, vector<1x128xf32>
    %49 = arith.truncf %45 : vector<8x128xf32> to vector<8x128xbf16>
    %cst_29 = arith.constant dense<0.000000e+00> : vector<8x128xf32>
    %50 = tpu.matmul %49, %47, %cst_29 {dimension_numbers = #tpu.dot_dimension_numbers<[1], [0], [0], [1], [0, 0, 1, 1], [], []>} : vector<8x128xbf16>, vector<128x128xbf16>, vector<8x128xf32> -> vector<8x128xf32>
    %51 = vector.broadcast %48 : vector<1x128xf32> to vector<8x128xf32>
    %52 = arith.addf %50, %51 : vector<8x128xf32>
    %cst_30 = arith.constant 5.000000e-01 : f32
    %53 = vector.broadcast %cst_30 : f32 to vector<8x128xf32>
    %54 = arith.mulf %53, %52 : vector<8x128xf32>
    %cst_31 = arith.constant 0.707106769 : f32
    %55 = vector.broadcast %cst_31 : f32 to vector<8x128xf32>
    %56 = arith.mulf %52, %55 : vector<8x128xf32>
    %57 = math.erf %56 : vector<8x128xf32>
    %cst_32 = arith.constant 1.000000e+00 : f32
    %58 = vector.broadcast %cst_32 : f32 to vector<8x128xf32>
    %59 = arith.addf %58, %57 : vector<8x128xf32>
    %60 = arith.mulf %54, %59 : vector<8x128xf32>
    %c4 = arith.constant 4 : index
    %c0_33 = arith.constant 0 : index
    %c0_34 = arith.constant 0 : index
    %61 = vector.load %arg2[%c4, %c0_33, %c0_34] : memref<7x128x128xbf16, #tpu.memory_space<vmem>>, vector<1x128x128xbf16>
    %62 = vector.shape_cast %61 : vector<1x128x128xbf16> to vector<128x128xbf16>
    %c4_35 = arith.constant 4 : index
    %c0_36 = arith.constant 0 : index
    %63 = vector.load %arg3[%c4_35, %c0_36] : memref<8x128xf32, #tpu.memory_space<vmem>>, vector<1x128xf32>
    %64 = arith.truncf %60 : vector<8x128xf32> to vector<8x128xbf16>
    %cst_37 = arith.constant dense<0.000000e+00> : vector<8x128xf32>
    %65 = tpu.matmul %64, %62, %cst_37 {dimension_numbers = #tpu.dot_dimension_numbers<[1], [0], [0], [1], [0, 0, 1, 1], [], []>} : vector<8x128xbf16>, vector<128x128xbf16>, vector<8x128xf32> -> vector<8x128xf32>
    %66 = vector.broadcast %63 : vector<1x128xf32> to vector<8x128xf32>
    %67 = arith.addf %65, %66 : vector<8x128xf32>
    %cst_38 = arith.constant 5.000000e-01 : f32
    %68 = vector.broadcast %cst_38 : f32 to vector<8x128xf32>
    %69 = arith.mulf %68, %67 : vector<8x128xf32>
    %cst_39 = arith.constant 0.707106769 : f32
    %70 = vector.broadcast %cst_39 : f32 to vector<8x128xf32>
    %71 = arith.mulf %67, %70 : vector<8x128xf32>
    %72 = math.erf %71 : vector<8x128xf32>
    %cst_40 = arith.constant 1.000000e+00 : f32
    %73 = vector.broadcast %cst_40 : f32 to vector<8x128xf32>
    %74 = arith.addf %73, %72 : vector<8x128xf32>
    %75 = arith.mulf %69, %74 : vector<8x128xf32>
    %c5 = arith.constant 5 : index
    %c0_41 = arith.constant 0 : index
    %c0_42 = arith.constant 0 : index
    %76 = vector.load %arg2[%c5, %c0_41, %c0_42] : memref<7x128x128xbf16, #tpu.memory_space<vmem>>, vector<1x128x128xbf16>
    %77 = vector.shape_cast %76 : vector<1x128x128xbf16> to vector<128x128xbf16>
    %c5_43 = arith.constant 5 : index
    %c0_44 = arith.constant 0 : index
    %78 = vector.load %arg3[%c5_43, %c0_44] : memref<8x128xf32, #tpu.memory_space<vmem>>, vector<1x128xf32>
    %79 = arith.truncf %75 : vector<8x128xf32> to vector<8x128xbf16>
    %cst_45 = arith.constant dense<0.000000e+00> : vector<8x128xf32>
    %80 = tpu.matmul %79, %77, %cst_45 {dimension_numbers = #tpu.dot_dimension_numbers<[1], [0], [0], [1], [0, 0, 1, 1], [], []>} : vector<8x128xbf16>, vector<128x128xbf16>, vector<8x128xf32> -> vector<8x128xf32>
    %81 = vector.broadcast %78 : vector<1x128xf32> to vector<8x128xf32>
    %82 = arith.addf %80, %81 : vector<8x128xf32>
    %cst_46 = arith.constant 5.000000e-01 : f32
    %83 = vector.broadcast %cst_46 : f32 to vector<8x128xf32>
    %84 = arith.mulf %83, %82 : vector<8x128xf32>
    %cst_47 = arith.constant 0.707106769 : f32
    %85 = vector.broadcast %cst_47 : f32 to vector<8x128xf32>
    %86 = arith.mulf %82, %85 : vector<8x128xf32>
    %87 = math.erf %86 : vector<8x128xf32>
    %cst_48 = arith.constant 1.000000e+00 : f32
    %88 = vector.broadcast %cst_48 : f32 to vector<8x128xf32>
    %89 = arith.addf %88, %87 : vector<8x128xf32>
    %90 = arith.mulf %84, %89 : vector<8x128xf32>
    %c6 = arith.constant 6 : index
    %c0_49 = arith.constant 0 : index
    %c0_50 = arith.constant 0 : index
    %91 = vector.load %arg2[%c6, %c0_49, %c0_50] : memref<7x128x128xbf16, #tpu.memory_space<vmem>>, vector<1x128x128xbf16>
    %92 = vector.shape_cast %91 : vector<1x128x128xbf16> to vector<128x128xbf16>
    %c6_51 = arith.constant 6 : index
    %c0_52 = arith.constant 0 : index
    %93 = vector.load %arg3[%c6_51, %c0_52] : memref<8x128xf32, #tpu.memory_space<vmem>>, vector<1x128xf32>
    %94 = arith.truncf %90 : vector<8x128xf32> to vector<8x128xbf16>
    %cst_53 = arith.constant dense<0.000000e+00> : vector<8x128xf32>
    %95 = tpu.matmul %94, %92, %cst_53 {dimension_numbers = #tpu.dot_dimension_numbers<[1], [0], [0], [1], [0, 0, 1, 1], [], []>} : vector<8x128xbf16>, vector<128x128xbf16>, vector<8x128xf32> -> vector<8x128xf32>
    %96 = vector.broadcast %93 : vector<1x128xf32> to vector<8x128xf32>
    %97 = arith.addf %95, %96 : vector<8x128xf32>
    %c0_54 = arith.constant 0 : index
    %c0_55 = arith.constant 0 : index
    %98 = vector.load %arg4[%c0_54, %c0_55] : memref<8x128xf32, #tpu.memory_space<vmem>>, vector<8x128xf32>
    tpu.vector_store %arg4[%c0_54, %c0_55], %97 {strides = array<i32>} : memref<8x128xf32, #tpu.memory_space<vmem>>, vector<8x128xf32>,
    return
  }
  func.func @transform_0(%arg0: i32) -> (i32, i32) {
    %c0_i32 = arith.constant 0 : i32
    %c0_i32_0 = arith.constant 0 : i32
    return %arg0, %c0_i32 : i32, i32
  }
  func.func @transform_1(%arg0: i32) -> (i32, i32, i32) {
    %c0_i32 = arith.constant 0 : i32
    %c0_i32_0 = arith.constant 0 : i32
    %c0_i32_1 = arith.constant 0 : i32
    %c0_i32_2 = arith.constant 0 : i32
    return %c0_i32, %c0_i32_0, %c0_i32_1 : i32, i32, i32
  }
  func.func @transform_2(%arg0: i32) -> (i32, i32) {
    %c0_i32 = arith.constant 0 : i32
    %c0_i32_0 = arith.constant 0 : i32
    %c0_i32_1 = arith.constant 0 : i32
    return %c0_i32, %c0_i32_0 : i32, i32
  }
  func.func @transform_3(%arg0: i32) -> (i32, i32) {
    %c0_i32 = arith.constant 0 : i32
    %c0_i32_0 = arith.constant 0 : i32
    return %arg0, %c0_i32 : i32, i32
  }
}

</mosaic_0001>

<llo_original>
// kernel: tpu_custom_call.1
$region0: #{tpu_custom_call.1}
  #allocation0 [shape = 'u32[]', space=smem, size = 0x4, offset = 0x4, fixed_abs, tag = 'smem constant byte address 0x4 - core index']
  #allocation1 [shape = 'u32[72,128]{1,0:T(1,128)}', space=vmem, size = 0x9000, scoped, tag = 'internal scratch']
  %s0 = inlined_call_operand.hbm [shape: f32[8,128], index: 0, kind: input, shape index: {}]
  %s1 = inlined_call_operand.hbm [shape: bf16[7,128,128], index: 1, kind: input, shape index: {}]
  %s2 = inlined_call_operand.hbm [shape: f32[8,128], index: 2, kind: input, shape index: {}]
  %s3 = inlined_call_operand.hbm [shape: f32[8,128], index: 3, kind: output, shape index: {}]
  %s4 = sld [smem:[#allocation0]]
  $region34: #{tpu_custom_call.1} parent=0
    _
  %s6 = ssub.s32 1, %s4
  %s7 = scalar_select 0, %s6, %s4
  $region1: #{tpu_custom_call.1} parent=0
    #allocation2 [shape = 'u8[4096]{0}', space=vmem, size = 0x1000, scoped, tag = 'input window, operand 0, single buffered']
    #allocation3 [shape = 's32[1]{0}', space=sflag, size = 0x4, scoped, tag = 'scoped memory for tpu_custom_call.1']
    #allocation4 [shape = 's32[1]{0}', space=sflag, size = 0x4, scoped, tag = 'scoped memory for tpu_custom_call.1']
    #allocation5 [shape = 'u8[229376]{0}', space=vmem, size = 0x38000, scoped, tag = 'input window, operand 1, single buffered']
    #allocation6 [shape = 's32[1]{0}', space=sflag, size = 0x4, scoped, tag = 'scoped memory for tpu_custom_call.1']
    #allocation7 [shape = 'u8[4096]{0}', space=vmem, size = 0x1000, scoped, tag = 'input window, operand 2, single buffered']
    #allocation8 [shape = 'u8[4096]{0}', space=vmem, size = 0x1000, scoped, tag = 'output window, operand 0, single buffered']
    %8 = vsyncpa [#allocation3], 0
    %9 = vsyncpa [#allocation6], 0
    %10 = vsyncpa [#allocation4], 0
    // Predicated region
    $region2: #{tpu_custom_call.1} parent=1 // pred_check
      _
    $region3: #{tpu_custom_call.1} parent=1 // pred_check_branch
      %12 = sbr.rel (0) target = $region5
    $region4: #{tpu_custom_call.1} parent=1 // pred_region
      %14 = vsyncadd [#allocation3], 0
      %s16 = sshll.u32 %s0, 4
      %s17 = int_to_ptr.hbm [resolvable:$true] %s16
      %s18 = sshll.u32 [#allocation2], 4
      %s19 = int_to_ptr.vmem [resolvable:$true] %s18
      %21 = dma.hbm_to_vmem [thread:$0]  %s17, 128, %s19, [#allocation3]
    $region5: #{tpu_custom_call.1} parent=1 // pred_fallthru
      _
    // Predicated region
    $region6: #{tpu_custom_call.1} parent=1 // pred_check
      _
    $region7: #{tpu_custom_call.1} parent=1 // pred_check_branch
      %23 = sbr.rel (0) target = $region9
    $region8: #{tpu_custom_call.1} parent=1 // pred_region
      %25 = vsyncadd [#allocation6], 0
      %s26 = sshll.u32 %s1, 4
      %s27 = int_to_ptr.hbm [resolvable:$true] %s26
      %s28 = sshll.u32 [#allocation5], 4
      %s29 = int_to_ptr.vmem [resolvable:$true] %s28
      %34 = dma.hbm_to_vmem [thread:$0]  %s27, 7168, %s29, [#allocation6], 64, 64, 4
    $region9: #{tpu_custom_call.1} parent=1 // pred_fallthru
      _
    // Predicated region
    $region10: #{tpu_custom_call.1} parent=1 // pred_check
      _
    $region11: #{tpu_custom_call.1} parent=1 // pred_check_branch
      %36 = sbr.rel (0) target = $region13
    $region12: #{tpu_custom_call.1} parent=1 // pred_region
      %38 = vsyncadd [#allocation6], 0
      %s40 = sshll.u32 %s2, 4
      %s41 = int_to_ptr.hbm [resolvable:$true] %s40
      %s42 = sshll.u32 [#allocation7], 4
      %s43 = int_to_ptr.vmem [resolvable:$true] %s42
      %45 = dma.hbm_to_vmem [thread:$0]  %s41, 128, %s43, [#allocation6]
    $region13: #{tpu_custom_call.1} parent=1 // pred_fallthru
      _
    // Predicated region
    $region14: #{tpu_custom_call.1} parent=1 // pred_check
      _
    $region15: #{tpu_custom_call.1} parent=1 // pred_check_branch
      %47 = sbr.rel (0) target = $region17
    $region16: #{tpu_custom_call.1} parent=1 // pred_region
      %49 = dma.done [#allocation3], 128
    $region17: #{tpu_custom_call.1} parent=1 // pred_fallthru
      _
    // Predicated region
    $region18: #{tpu_custom_call.1} parent=1 // pred_check
      _
    $region19: #{tpu_custom_call.1} parent=1 // pred_check_branch
      %51 = sbr.rel (0) target = $region21
    $region20: #{tpu_custom_call.1} parent=1 // pred_region
      %53 = dma.done [#allocation6], 7168
    $region21: #{tpu_custom_call.1} parent=1 // pred_fallthru
      _
    // Predicated region
    $region22: #{tpu_custom_call.1} parent=1 // pred_check
      _
    $region23: #{tpu_custom_call.1} parent=1 // pred_check_branch
      %55 = sbr.rel (0) target = $region25
    $region24: #{tpu_custom_call.1} parent=1 // pred_region
      %57 = dma.done [#allocation6], 128
    $region25: #{tpu_custom_call.1} parent=1 // pred_fallthru
      _
    %v58 = vld [vmem:[#allocation2] sm:$0xff]
    %v59 = vld [vmem:[#allocation5] sm:$0xf]
    %v60 = vld [vmem:[#allocation5 + $0x4] sm:$0xf]
    %v61 = vld [vmem:[#allocation5 + $0x8] sm:$0xf]
    %v62 = vld [vmem:[#allocation5 + $0xc] sm:$0xf]
    %v63 = vld [vmem:[#allocation5 + $0x10] sm:$0xf]
    %v64 = vld [vmem:[#allocation5 + $0x14] sm:$0xf]
    %v65 = vld [vmem:[#allocation5 + $0x18] sm:$0xf]
    %v66 = vld [vmem:[#allocation5 + $0x1c] sm:$0xf]
    %v67 = vld [vmem:[#allocation5 + $0x20] sm:$0xf]
    %v68 = vld [vmem:[#allocation5 + $0x24] sm:$0xf]
    %v69 = vld [vmem:[#allocation5 + $0x28] sm:$0xf]
    %v70 = vld [vmem:[#allocation5 + $0x2c] sm:$0xf]
    %v71 = vld [vmem:[#allocation5 + $0x30] sm:$0xf]
    %v72 = vld [vmem:[#allocation5 + $0x34] sm:$0xf]
    %v73 = vld [vmem:[#allocation5 + $0x38] sm:$0xf]
    %v74 = vld [vmem:[#allocation5 + $0x3c] sm:$0xf]
    %v75 = vld [vmem:[#allocation7] sm:$0x1]
    %v76 = vpack.c.bf16 %v58, %v58
    %v77 = vperm.slane %v75, 0
    %v94 = vunpack.c.l.b16 %v59
    %v95 = vunpack.c.l.b16 %v60
    %v96 = vunpack.c.l.b16 %v61
    %v97 = vunpack.c.l.b16 %v62
    %v98 = vunpack.c.l.b16 %v63
    %v99 = vunpack.c.l.b16 %v64
    %v100 = vunpack.c.l.b16 %v65
    %v101 = vunpack.c.l.b16 %v66
    %v102 = vunpack.c.l.b16 %v67
    %v103 = vunpack.c.l.b16 %v68
    %v104 = vunpack.c.l.b16 %v69
    %v105 = vunpack.c.l.b16 %v70
    %v106 = vunpack.c.l.b16 %v71
    %v107 = vunpack.c.l.b16 %v72
    %v108 = vunpack.c.l.b16 %v73
    %v109 = vunpack.c.l.b16 %v74
    %v110 = vpack.c.b16 %v95, %v94
    %v111 = vpack.c.b16 %v97, %v96
    %v112 = vpack.c.b16 %v99, %v98
    %v113 = vpack.c.b16 %v101, %v100
    %v114 = vpack.c.b16 %v103, %v102
    %v115 = vpack.c.b16 %v105, %v104
    %v116 = vpack.c.b16 %v107, %v106
    %v117 = vpack.c.b16 %v109, %v108
    %126 = vmatpush.bf16.msra.mxu0 %v117
    %127 = vmatpush.bf16.msra.mxu0 %v116
    %128 = vmatpush.bf16.msra.mxu0 %v115
    %129 = vmatpush.bf16.msra.mxu0 %v114
    %130 = vmatpush.bf16.msra.mxu0 %v113
    %131 = vmatpush.bf16.msra.mxu0 %v112
    %132 = vmatpush.bf16.msra.mxu0 %v111
    %133 = vmatpush.bf16.msra.mxu0 %v110
    %134 = vmatmul.bf16.gmra.mxu0 %v76
    %v135 = vpop.f32.mrf.mxu0
    %v136 = vadd.f32 %v77, %v135
    %v137 = vpop.f32.mrf.mxu0
    %138 = vdwg.mxu0
    %v139 = vmul.f32 %v136, 0.5
    %v140 = vmul.f32 %v136, 0.70710677
    %v141 = vmul.f32 %v140, %v140
    %v142 = vmin.f32 16.0, %v141
    %v143 = vmul.f32 %v142, 2.1237322e-06
    %v144 = vadd.f32 %v143, 0.00028619796
    %v145 = vmul.f32 %v142, %v144
    %v146 = vadd.f32 %v145, 0.0036580483
    %v147 = vmul.f32 %v142, %v146
    %v148 = vadd.f32 %v147, 0.05243302
    %v149 = vmul.f32 %v142, %v148
    %v150 = vadd.f32 %v149, 0.18741608
    %v151 = vmul.f32 %v142, %v150
    %v152 = vadd.f32 %v151, 1.1283791
    %v153 = vmul.f32 %v140, %v152
    %v154 = vmul.f32 %v142, 3.8918573e-05
    %v155 = vadd.f32 %v154, 0.001143296
    %v156 = vmul.f32 %v142, %v155
    %v157 = vadd.f32 %v156, 0.014752088
    %v158 = vmul.f32 %v142, %v157
    %v159 = vadd.f32 %v158, 0.112945676
    %v160 = vmul.f32 %v142, %v159
    %v161 = vadd.f32 %v160, 0.4994258
    %v162 = vmul.f32 %v142, %v161
    %v163 = vadd.f32 %v162, 1.0
    %v164 = vrcp.pop %v163
    %v165 = vmul.f32 %v163, %v164
    %v166 = vsub.f32 1.0, %v165
    %v167 = vmul.f32 %v164, %v166
    %v168 = vadd.f32 %v164, %v167
    %vm169 = vweird.f32 %v163
    %vm170 = vweird.f32 %v164
    %vm171 = vmor %vm169, %vm170
    %v172 = vsel %vm171, %v164, %v168
    %v173 = vand.u32 2147483647, %v163
    %vm174 = vcmp.eq.f32.partialorder %v173, 8.507059e+37
    %v175 = vand.u32 %v163, 2147483648
    %v176 = vor.u32 1.1754944e-38, %v175
    %v177 = vsel %vm174, %v176, %v172
    %v178 = vmul.f32 %v153, %v177
    %v179 = vmin.f32 %v178, 1.0
    %v180 = vmax.f32 %v179, -1.0
    %v181 = vadd.f32 %v180, 1.0
    %v182 = vmul.f32 %v139, %v181
    %s183 = scalar_lea.vmem [#allocation5], 64
    %v184 = vld [vmem:[%s183] sm:$0xf]
    %v185 = vld [vmem:[%s183 + $0x4] sm:$0xf]
    %v186 = vld [vmem:[%s183 + $0x8] sm:$0xf]
    %v187 = vld [vmem:[%s183 + $0xc] sm:$0xf]
    %v188 = vld [vmem:[%s183 + $0x10] sm:$0xf]
    %v189 = vld [vmem:[%s183 + $0x14] sm:$0xf]
    %v190 = vld [vmem:[%s183 + $0x18] sm:$0xf]
    %v191 = vld [vmem:[%s183 + $0x1c] sm:$0xf]
    %v192 = vld [vmem:[%s183 + $0x20] sm:$0xf]
    %v193 = vld [vmem:[%s183 + $0x24] sm:$0xf]
    %v194 = vld [vmem:[%s183 + $0x28] sm:$0xf]
    %v195 = vld [vmem:[%s183 + $0x2c] sm:$0xf]
    %v196 = vld [vmem:[%s183 + $0x30] sm:$0xf]
    %v197 = vld [vmem:[%s183 + $0x34] sm:$0xf]
    %v198 = vld [vmem:[%s183 + $0x38] sm:$0xf]
    %v199 = vld [vmem:[%s183 + $0x3c] sm:$0xf]
    %v200 = vld [vmem:[#allocation7 + $0x1] sm:$0x1]
    %v201 = vpack.c.bf16 %v182, %v182
    %v202 = vperm.slane %v200, 0
    %v219 = vunpack.c.l.b16 %v184
    %v220 = vunpack.c.l.b16 %v185
    %v221 = vunpack.c.l.b16 %v186
    %v222 = vunpack.c.l.b16 %v187
    %v223 = vunpack.c.l.b16 %v188
    %v224 = vunpack.c.l.b16 %v189
    %v225 = vunpack.c.l.b16 %v190
    %v226 = vunpack.c.l.b16 %v191
    %v227 = vunpack.c.l.b16 %v192
    %v228 = vunpack.c.l.b16 %v193
    %v229 = vunpack.c.l.b16 %v194
    %v230 = vunpack.c.l.b16 %v195
    %v231 = vunpack.c.l.b16 %v196
    %v232 = vunpack.c.l.b16 %v197
    %v233 = vunpack.c.l.b16 %v198
    %v234 = vunpack.c.l.b16 %v199
    %v235 = vpack.c.b16 %v220, %v219
    %v236 = vpack.c.b16 %v222, %v221
    %v237 = vpack.c.b16 %v224, %v223
    %v238 = vpack.c.b16 %v226, %v225
    %v239 = vpack.c.b16 %v228, %v227
    %v240 = vpack.c.b16 %v230, %v229
    %v241 = vpack.c.b16 %v232, %v231
    %v242 = vpack.c.b16 %v234, %v233
    %251 = vmatpush.bf16.msra.mxu0 %v242
    %252 = vmatpush.bf16.msra.mxu0 %v241
    %253 = vmatpush.bf16.msra.mxu0 %v240
    %254 = vmatpush.bf16.msra.mxu0 %v239
    %255 = vmatpush.bf16.msra.mxu0 %v238
    %256 = vmatpush.bf16.msra.mxu0 %v237
    %257 = vmatpush.bf16.msra.mxu0 %v236
    %258 = vmatpush.bf16.msra.mxu0 %v235
    %259 = vmatmul.bf16.gmra.mxu0 %v201
    %v260 = vpop.f32.mrf.mxu0
    %v261 = vadd.f32 %v202, %v260
    %v262 = vpop.f32.mrf.mxu0
    %263 = vdwg.mxu0
    %v264 = vmul.f32 %v261, 0.5
    %v265 = vmul.f32 %v261, 0.70710677
    %v266 = vmul.f32 %v265, %v265
    %v267 = vmin.f32 16.0, %v266
    %v268 = vmul.f32 %v267, 2.1237322e-06
    %v269 = vadd.f32 %v268, 0.00028619796
    %v270 = vmul.f32 %v267, %v269
    %v271 = vadd.f32 %v270, 0.0036580483
    %v272 = vmul.f32 %v267, %v271
    %v273 = vadd.f32 %v272, 0.05243302
    %v274 = vmul.f32 %v267, %v273
    %v275 = vadd.f32 %v274, 0.18741608
    %v276 = vmul.f32 %v267, %v275
    %v277 = vadd.f32 %v276, 1.1283791
    %v278 = vmul.f32 %v265, %v277
    %v279 = vmul.f32 %v267, 3.8918573e-05
    %v280 = vadd.f32 %v279, 0.001143296
    %v281 = vmul.f32 %v267, %v280
    %v282 = vadd.f32 %v281, 0.014752088
    %v283 = vmul.f32 %v267, %v282
    %v284 = vadd.f32 %v283, 0.112945676
    %v285 = vmul.f32 %v267, %v284
    %v286 = vadd.f32 %v285, 0.4994258
    %v287 = vmul.f32 %v267, %v286
    %v288 = vadd.f32 %v287, 1.0
    %v289 = vrcp.pop %v288
    %v290 = vmul.f32 %v288, %v289
    %v291 = vsub.f32 1.0, %v290
    %v292 = vmul.f32 %v289, %v291
    %v293 = vadd.f32 %v289, %v292
    %vm294 = vweird.f32 %v288
    %vm295 = vweird.f32 %v289
    %vm296 = vmor %vm294, %vm295
    %v297 = vsel %vm296, %v289, %v293
    %v298 = vand.u32 2147483647, %v288
    %vm299 = vcmp.eq.f32.partialorder %v298, 8.507059e+37
    %v300 = vand.u32 %v288, 2147483648
    %v301 = vor.u32 1.1754944e-38, %v300
    %v302 = vsel %vm299, %v301, %v297
    %v303 = vmul.f32 %v278, %v302
    %v304 = vmin.f32 %v303, 1.0
    %v305 = vmax.f32 %v304, -1.0
    %v306 = vadd.f32 %v305, 1.0
    %v307 = vmul.f32 %v264, %v306
    %s308 = scalar_lea.vmem [#allocation5], 128
    %v309 = vld [vmem:[%s308] sm:$0xf]
    %v310 = vld [vmem:[%s308 + $0x4] sm:$0xf]
    %v311 = vld [vmem:[%s308 + $0x8] sm:$0xf]
    %v312 = vld [vmem:[%s308 + $0xc] sm:$0xf]
    %v313 = vld [vmem:[%s308 + $0x10] sm:$0xf]
    %v314 = vld [vmem:[%s308 + $0x14] sm:$0xf]
    %v315 = vld [vmem:[%s308 + $0x18] sm:$0xf]
    %v316 = vld [vmem:[%s308 + $0x1c] sm:$0xf]
    %v317 = vld [vmem:[%s308 + $0x20] sm:$0xf]
    %v318 = vld [vmem:[%s308 + $0x24] sm:$0xf]
    %v319 = vld [vmem:[%s308 + $0x28] sm:$0xf]
    %v320 = vld [vmem:[%s308 + $0x2c] sm:$0xf]
    %v321 = vld [vmem:[%s308 + $0x30] sm:$0xf]
    %v322 = vld [vmem:[%s308 + $0x34] sm:$0xf]
    %v323 = vld [vmem:[%s308 + $0x38] sm:$0xf]
    %v324 = vld [vmem:[%s308 + $0x3c] sm:$0xf]
    %v325 = vld [vmem:[#allocation7 + $0x2] sm:$0x1]
    %v326 = vpack.c.bf16 %v307, %v307
    %v327 = vperm.slane %v325, 0
    %v344 = vunpack.c.l.b16 %v309
    %v345 = vunpack.c.l.b16 %v310
    %v346 = vunpack.c.l.b16 %v311
    %v347 = vunpack.c.l.b16 %v312
    %v348 = vunpack.c.l.b16 %v313
    %v349 = vunpack.c.l.b16 %v314
    %v350 = vunpack.c.l.b16 %v315
    %v351 = vunpack.c.l.b16 %v316
    %v352 = vunpack.c.l.b16 %v317
    %v353 = vunpack.c.l.b16 %v318
    %v354 = vunpack.c.l.b16 %v319
    %v355 = vunpack.c.l.b16 %v320
    %v356 = vunpack.c.l.b16 %v321
    %v357 = vunpack.c.l.b16 %v322
    %v358 = vunpack.c.l.b16 %v323
    %v359 = vunpack.c.l.b16 %v324
    %v360 = vpack.c.b16 %v345, %v344
    %v361 = vpack.c.b16 %v347, %v346
    %v362 = vpack.c.b16 %v349, %v348
    %v363 = vpack.c.b16 %v351, %v350
    %v364 = vpack.c.b16 %v353, %v352
    %v365 = vpack.c.b16 %v355, %v354
    %v366 = vpack.c.b16 %v357, %v356
    %v367 = vpack.c.b16 %v359, %v358
    %376 = vmatpush.bf16.msra.mxu0 %v367
    %377 = vmatpush.bf16.msra.mxu0 %v366
    %378 = vmatpush.bf16.msra.mxu0 %v365
    %379 = vmatpush.bf16.msra.mxu0 %v364
    %380 = vmatpush.bf16.msra.mxu0 %v363
    %381 = vmatpush.bf16.msra.mxu0 %v362
    %382 = vmatpush.bf16.msra.mxu0 %v361
    %383 = vmatpush.bf16.msra.mxu0 %v360
    %384 = vmatmul.bf16.gmra.mxu0 %v326
    %v385 = vpop.f32.mrf.mxu0
    %v386 = vadd.f32 %v327, %v385
    %v387 = vpop.f32.mrf.mxu0
    %388 = vdwg.mxu0
    %v389 = vmul.f32 %v386, 0.5
    %v390 = vmul.f32 %v386, 0.70710677
    %v391 = vmul.f32 %v390, %v390
    %v392 = vmin.f32 16.0, %v391
    %v393 = vmul.f32 %v392, 2.1237322e-06
    %v394 = vadd.f32 %v393, 0.00028619796
    %v395 = vmul.f32 %v392, %v394
    %v396 = vadd.f32 %v395, 0.0036580483
    %v397 = vmul.f32 %v392, %v396
    %v398 = vadd.f32 %v397, 0.05243302
    %v399 = vmul.f32 %v392, %v398
    %v400 = vadd.f32 %v399, 0.18741608
    %v401 = vmul.f32 %v392, %v400
    %v402 = vadd.f32 %v401, 1.1283791
    %v403 = vmul.f32 %v390, %v402
    %v404 = vmul.f32 %v392, 3.8918573e-05
    %v405 = vadd.f32 %v404, 0.001143296
    %v406 = vmul.f32 %v392, %v405
    %v407 = vadd.f32 %v406, 0.014752088
    %v408 = vmul.f32 %v392, %v407
    %v409 = vadd.f32 %v408, 0.112945676
    %v410 = vmul.f32 %v392, %v409
    %v411 = vadd.f32 %v410, 0.4994258
    %v412 = vmul.f32 %v392, %v411
    %v413 = vadd.f32 %v412, 1.0
    %v414 = vrcp.pop %v413
    %v415 = vmul.f32 %v413, %v414
    %v416 = vsub.f32 1.0, %v415
    %v417 = vmul.f32 %v414, %v416
    %v418 = vadd.f32 %v414, %v417
    %vm419 = vweird.f32 %v413
    %vm420 = vweird.f32 %v414
    %vm421 = vmor %vm419, %vm420
    %v422 = vsel %vm421, %v414, %v418
    %v423 = vand.u32 2147483647, %v413
    %vm424 = vcmp.eq.f32.partialorder %v423, 8.507059e+37
    %v425 = vand.u32 %v413, 2147483648
    %v426 = vor.u32 1.1754944e-38, %v425
    %v427 = vsel %vm424, %v426, %v422
    %v428 = vmul.f32 %v403, %v427
    %v429 = vmin.f32 %v428, 1.0
    %v430 = vmax.f32 %v429, -1.0
    %v431 = vadd.f32 %v430, 1.0
    %v432 = vmul.f32 %v389, %v431
    %s433 = scalar_lea.vmem [#allocation5], 192
    %v434 = vld [vmem:[%s433] sm:$0xf]
    %v435 = vld [vmem:[%s433 + $0x4] sm:$0xf]
    %v436 = vld [vmem:[%s433 + $0x8] sm:$0xf]
    %v437 = vld [vmem:[%s433 + $0xc] sm:$0xf]
    %v438 = vld [vmem:[%s433 + $0x10] sm:$0xf]
    %v439 = vld [vmem:[%s433 + $0x14] sm:$0xf]
    %v440 = vld [vmem:[%s433 + $0x18] sm:$0xf]
    %v441 = vld [vmem:[%s433 + $0x1c] sm:$0xf]
    %v442 = vld [vmem:[%s433 + $0x20] sm:$0xf]
    %v443 = vld [vmem:[%s433 + $0x24] sm:$0xf]
    %v444 = vld [vmem:[%s433 + $0x28] sm:$0xf]
    %v445 = vld [vmem:[%s433 + $0x2c] sm:$0xf]
    %v446 = vld [vmem:[%s433 + $0x30] sm:$0xf]
    %v447 = vld [vmem:[%s433 + $0x34] sm:$0xf]
    %v448 = vld [vmem:[%s433 + $0x38] sm:$0xf]
    %v449 = vld [vmem:[%s433 + $0x3c] sm:$0xf]
    %v450 = vld [vmem:[#allocation7 + $0x3] sm:$0x1]
    %v451 = vpack.c.bf16 %v432, %v432
    %v452 = vperm.slane %v450, 0
    %v469 = vunpack.c.l.b16 %v434
    %v470 = vunpack.c.l.b16 %v435
    %v471 = vunpack.c.l.b16 %v436
    %v472 = vunpack.c.l.b16 %v437
    %v473 = vunpack.c.l.b16 %v438
    %v474 = vunpack.c.l.b16 %v439
    %v475 = vunpack.c.l.b16 %v440
    %v476 = vunpack.c.l.b16 %v441
    %v477 = vunpack.c.l.b16 %v442
    %v478 = vunpack.c.l.b16 %v443
    %v479 = vunpack.c.l.b16 %v444
    %v480 = vunpack.c.l.b16 %v445
    %v481 = vunpack.c.l.b16 %v446
    %v482 = vunpack.c.l.b16 %v447
    %v483 = vunpack.c.l.b16 %v448
    %v484 = vunpack.c.l.b16 %v449
    %v485 = vpack.c.b16 %v470, %v469
    %v486 = vpack.c.b16 %v472, %v471
    %v487 = vpack.c.b16 %v474, %v473
    %v488 = vpack.c.b16 %v476, %v475
    %v489 = vpack.c.b16 %v478, %v477
    %v490 = vpack.c.b16 %v480, %v479
    %v491 = vpack.c.b16 %v482, %v481
    %v492 = vpack.c.b16 %v484, %v483
    %501 = vmatpush.bf16.msra.mxu0 %v492
    %502 = vmatpush.bf16.msra.mxu0 %v491
    %503 = vmatpush.bf16.msra.mxu0 %v490
    %504 = vmatpush.bf16.msra.mxu0 %v489
    %505 = vmatpush.bf16.msra.mxu0 %v488
    %506 = vmatpush.bf16.msra.mxu0 %v487
    %507 = vmatpush.bf16.msra.mxu0 %v486
    %508 = vmatpush.bf16.msra.mxu0 %v485
    %509 = vmatmul.bf16.gmra.mxu0 %v451
    %v510 = vpop.f32.mrf.mxu0
    %v511 = vadd.f32 %v452, %v510
    %v512 = vpop.f32.mrf.mxu0
    %513 = vdwg.mxu0
    %v514 = vmul.f32 %v511, 0.5
    %v515 = vmul.f32 %v511, 0.70710677
    %v516 = vmul.f32 %v515, %v515
    %v517 = vmin.f32 16.0, %v516
    %v518 = vmul.f32 %v517, 2.1237322e-06
    %v519 = vadd.f32 %v518, 0.00028619796
    %v520 = vmul.f32 %v517, %v519
    %v521 = vadd.f32 %v520, 0.0036580483
    %v522 = vmul.f32 %v517, %v521
    %v523 = vadd.f32 %v522, 0.05243302
    %v524 = vmul.f32 %v517, %v523
    %v525 = vadd.f32 %v524, 0.18741608
    %v526 = vmul.f32 %v517, %v525
    %v527 = vadd.f32 %v526, 1.1283791
    %v528 = vmul.f32 %v515, %v527
    %v529 = vmul.f32 %v517, 3.8918573e-05
    %v530 = vadd.f32 %v529, 0.001143296
    %v531 = vmul.f32 %v517, %v530
    %v532 = vadd.f32 %v531, 0.014752088
    %v533 = vmul.f32 %v517, %v532
    %v534 = vadd.f32 %v533, 0.112945676
    %v535 = vmul.f32 %v517, %v534
    %v536 = vadd.f32 %v535, 0.4994258
    %v537 = vmul.f32 %v517, %v536
    %v538 = vadd.f32 %v537, 1.0
    %v539 = vrcp.pop %v538
    %v540 = vmul.f32 %v538, %v539
    %v541 = vsub.f32 1.0, %v540
    %v542 = vmul.f32 %v539, %v541
    %v543 = vadd.f32 %v539, %v542
    %vm544 = vweird.f32 %v538
    %vm545 = vweird.f32 %v539
    %vm546 = vmor %vm544, %vm545
    %v547 = vsel %vm546, %v539, %v543
    %v548 = vand.u32 2147483647, %v538
    %vm549 = vcmp.eq.f32.partialorder %v548, 8.507059e+37
    %v550 = vand.u32 %v538, 2147483648
    %v551 = vor.u32 1.1754944e-38, %v550
    %v552 = vsel %vm549, %v551, %v547
    %v553 = vmul.f32 %v528, %v552
    %v554 = vmin.f32 %v553, 1.0
    %v555 = vmax.f32 %v554, -1.0
    %v556 = vadd.f32 %v555, 1.0
    %v557 = vmul.f32 %v514, %v556
    %s558 = scalar_lea.vmem [#allocation5], 256
    %v559 = vld [vmem:[%s558] sm:$0xf]
    %v560 = vld [vmem:[%s558 + $0x4] sm:$0xf]
    %v561 = vld [vmem:[%s558 + $0x8] sm:$0xf]
    %v562 = vld [vmem:[%s558 + $0xc] sm:$0xf]
    %v563 = vld [vmem:[%s558 + $0x10] sm:$0xf]
    %v564 = vld [vmem:[%s558 + $0x14] sm:$0xf]
    %v565 = vld [vmem:[%s558 + $0x18] sm:$0xf]
    %v566 = vld [vmem:[%s558 + $0x1c] sm:$0xf]
    %v567 = vld [vmem:[%s558 + $0x20] sm:$0xf]
    %v568 = vld [vmem:[%s558 + $0x24] sm:$0xf]
    %v569 = vld [vmem:[%s558 + $0x28] sm:$0xf]
    %v570 = vld [vmem:[%s558 + $0x2c] sm:$0xf]
    %v571 = vld [vmem:[%s558 + $0x30] sm:$0xf]
    %v572 = vld [vmem:[%s558 + $0x34] sm:$0xf]
    %v573 = vld [vmem:[%s558 + $0x38] sm:$0xf]
    %v574 = vld [vmem:[%s558 + $0x3c] sm:$0xf]
    %v575 = vld [vmem:[#allocation7 + $0x4] sm:$0x1]
    %v576 = vpack.c.bf16 %v557, %v557
    %v577 = vperm.slane %v575, 0
    %v594 = vunpack.c.l.b16 %v559
    %v595 = vunpack.c.l.b16 %v560
    %v596 = vunpack.c.l.b16 %v561
    %v597 = vunpack.c.l.b16 %v562
    %v598 = vunpack.c.l.b16 %v563
    %v599 = vunpack.c.l.b16 %v564
    %v600 = vunpack.c.l.b16 %v565
    %v601 = vunpack.c.l.b16 %v566
    %v602 = vunpack.c.l.b16 %v567
    %v603 = vunpack.c.l.b16 %v568
    %v604 = vunpack.c.l.b16 %v569
    %v605 = vunpack.c.l.b16 %v570
    %v606 = vunpack.c.l.b16 %v571
    %v607 = vunpack.c.l.b16 %v572
    %v608 = vunpack.c.l.b16 %v573
    %v609 = vunpack.c.l.b16 %v574
    %v610 = vpack.c.b16 %v595, %v594
    %v611 = vpack.c.b16 %v597, %v596
    %v612 = vpack.c.b16 %v599, %v598
    %v613 = vpack.c.b16 %v601, %v600
    %v614 = vpack.c.b16 %v603, %v602
    %v615 = vpack.c.b16 %v605, %v604
    %v616 = vpack.c.b16 %v607, %v606
    %v617 = vpack.c.b16 %v609, %v608
    %626 = vmatpush.bf16.msra.mxu0 %v617
    %627 = vmatpush.bf16.msra.mxu0 %v616
    %628 = vmatpush.bf16.msra.mxu0 %v615
    %629 = vmatpush.bf16.msra.mxu0 %v614
    %630 = vmatpush.bf16.msra.mxu0 %v613
    %631 = vmatpush.bf16.msra.mxu0 %v612
    %632 = vmatpush.bf16.msra.mxu0 %v611
    %633 = vmatpush.bf16.msra.mxu0 %v610
    %634 = vmatmul.bf16.gmra.mxu0 %v576
    %v635 = vpop.f32.mrf.mxu0
    %v636 = vadd.f32 %v577, %v635
    %v637 = vpop.f32.mrf.mxu0
    %638 = vdwg.mxu0
    %v639 = vmul.f32 %v636, 0.5
    %v640 = vmul.f32 %v636, 0.70710677
    %v641 = vmul.f32 %v640, %v640
    %v642 = vmin.f32 16.0, %v641
    %v643 = vmul.f32 %v642, 2.1237322e-06
    %v644 = vadd.f32 %v643, 0.00028619796
    %v645 = vmul.f32 %v642, %v644
    %v646 = vadd.f32 %v645, 0.0036580483
    %v647 = vmul.f32 %v642, %v646
    %v648 = vadd.f32 %v647, 0.05243302
    %v649 = vmul.f32 %v642, %v648
    %v650 = vadd.f32 %v649, 0.18741608
    %v651 = vmul.f32 %v642, %v650
    %v652 = vadd.f32 %v651, 1.1283791
    %v653 = vmul.f32 %v640, %v652
    %v654 = vmul.f32 %v642, 3.8918573e-05
    %v655 = vadd.f32 %v654, 0.001143296
    %v656 = vmul.f32 %v642, %v655
    %v657 = vadd.f32 %v656, 0.014752088
    %v658 = vmul.f32 %v642, %v657
    %v659 = vadd.f32 %v658, 0.112945676
    %v660 = vmul.f32 %v642, %v659
    %v661 = vadd.f32 %v660, 0.4994258
    %v662 = vmul.f32 %v642, %v661
    %v663 = vadd.f32 %v662, 1.0
    %v664 = vrcp.pop %v663
    %v665 = vmul.f32 %v663, %v664
    %v666 = vsub.f32 1.0, %v665
    %v667 = vmul.f32 %v664, %v666
    %v668 = vadd.f32 %v664, %v667
    %vm669 = vweird.f32 %v663
    %vm670 = vweird.f32 %v664
    %vm671 = vmor %vm669, %vm670
    %v672 = vsel %vm671, %v664, %v668
    %v673 = vand.u32 2147483647, %v663
    %vm674 = vcmp.eq.f32.partialorder %v673, 8.507059e+37
    %v675 = vand.u32 %v663, 2147483648
    %v676 = vor.u32 1.1754944e-38, %v675
    %v677 = vsel %vm674, %v676, %v672
    %v678 = vmul.f32 %v653, %v677
    %v679 = vmin.f32 %v678, 1.0
    %v680 = vmax.f32 %v679, -1.0
    %v681 = vadd.f32 %v680, 1.0
    %v682 = vmul.f32 %v639, %v681
    %s683 = scalar_lea.vmem [#allocation5], 320
    %v684 = vld [vmem:[%s683] sm:$0xf]
    %v685 = vld [vmem:[%s683 + $0x4] sm:$0xf]
    %v686 = vld [vmem:[%s683 + $0x8] sm:$0xf]
    %v687 = vld [vmem:[%s683 + $0xc] sm:$0xf]
    %v688 = vld [vmem:[%s683 + $0x10] sm:$0xf]
    %v689 = vld [vmem:[%s683 + $0x14] sm:$0xf]
    %v690 = vld [vmem:[%s683 + $0x18] sm:$0xf]
    %v691 = vld [vmem:[%s683 + $0x1c] sm:$0xf]
    %v692 = vld [vmem:[%s683 + $0x20] sm:$0xf]
    %v693 = vld [vmem:[%s683 + $0x24] sm:$0xf]
    %v694 = vld [vmem:[%s683 + $0x28] sm:$0xf]
    %v695 = vld [vmem:[%s683 + $0x2c] sm:$0xf]
    %v696 = vld [vmem:[%s683 + $0x30] sm:$0xf]
    %v697 = vld [vmem:[%s683 + $0x34] sm:$0xf]
    %v698 = vld [vmem:[%s683 + $0x38] sm:$0xf]
    %v699 = vld [vmem:[%s683 + $0x3c] sm:$0xf]
    %v700 = vld [vmem:[#allocation7 + $0x5] sm:$0x1]
    %v701 = vpack.c.bf16 %v682, %v682
    %v702 = vperm.slane %v700, 0
    %v719 = vunpack.c.l.b16 %v684
    %v720 = vunpack.c.l.b16 %v685
    %v721 = vunpack.c.l.b16 %v686
    %v722 = vunpack.c.l.b16 %v687
    %v723 = vunpack.c.l.b16 %v688
    %v724 = vunpack.c.l.b16 %v689
    %v725 = vunpack.c.l.b16 %v690
    %v726 = vunpack.c.l.b16 %v691
    %v727 = vunpack.c.l.b16 %v692
    %v728 = vunpack.c.l.b16 %v693
    %v729 = vunpack.c.l.b16 %v694
    %v730 = vunpack.c.l.b16 %v695
    %v731 = vunpack.c.l.b16 %v696
    %v732 = vunpack.c.l.b16 %v697
    %v733 = vunpack.c.l.b16 %v698
    %v734 = vunpack.c.l.b16 %v699
    %v735 = vpack.c.b16 %v720, %v719
    %v736 = vpack.c.b16 %v722, %v721
    %v737 = vpack.c.b16 %v724, %v723
    %v738 = vpack.c.b16 %v726, %v725
    %v739 = vpack.c.b16 %v728, %v727
    %v740 = vpack.c.b16 %v730, %v729
    %v741 = vpack.c.b16 %v732, %v731
    %v742 = vpack.c.b16 %v734, %v733
    %751 = vmatpush.bf16.msra.mxu0 %v742
    %752 = vmatpush.bf16.msra.mxu0 %v741
    %753 = vmatpush.bf16.msra.mxu0 %v740
    %754 = vmatpush.bf16.msra.mxu0 %v739
    %755 = vmatpush.bf16.msra.mxu0 %v738
    %756 = vmatpush.bf16.msra.mxu0 %v737
    %757 = vmatpush.bf16.msra.mxu0 %v736
    %758 = vmatpush.bf16.msra.mxu0 %v735
    %759 = vmatmul.bf16.gmra.mxu0 %v701
    %v760 = vpop.f32.mrf.mxu0
    %v761 = vadd.f32 %v702, %v760
    %v762 = vpop.f32.mrf.mxu0
    %763 = vdwg.mxu0
    %v764 = vmul.f32 %v761, 0.5
    %v765 = vmul.f32 %v761, 0.70710677
    %v766 = vmul.f32 %v765, %v765
    %v767 = vmin.f32 16.0, %v766
    %v768 = vmul.f32 %v767, 2.1237322e-06
    %v769 = vadd.f32 %v768, 0.00028619796
    %v770 = vmul.f32 %v767, %v769
    %v771 = vadd.f32 %v770, 0.0036580483
    %v772 = vmul.f32 %v767, %v771
    %v773 = vadd.f32 %v772, 0.05243302
    %v774 = vmul.f32 %v767, %v773
    %v775 = vadd.f32 %v774, 0.18741608
    %v776 = vmul.f32 %v767, %v775
    %v777 = vadd.f32 %v776, 1.1283791
    %v778 = vmul.f32 %v765, %v777
    %v779 = vmul.f32 %v767, 3.8918573e-05
    %v780 = vadd.f32 %v779, 0.001143296
    %v781 = vmul.f32 %v767, %v780
    %v782 = vadd.f32 %v781, 0.014752088
    %v783 = vmul.f32 %v767, %v782
    %v784 = vadd.f32 %v783, 0.112945676
    %v785 = vmul.f32 %v767, %v784
    %v786 = vadd.f32 %v785, 0.4994258
    %v787 = vmul.f32 %v767, %v786
    %v788 = vadd.f32 %v787, 1.0
    %v789 = vrcp.pop %v788
    %v790 = vmul.f32 %v788, %v789
    %v791 = vsub.f32 1.0, %v790
    %v792 = vmul.f32 %v789, %v791
    %v793 = vadd.f32 %v789, %v792
    %vm794 = vweird.f32 %v788
    %vm795 = vweird.f32 %v789
    %vm796 = vmor %vm794, %vm795
    %v797 = vsel %vm796, %v789, %v793
    %v798 = vand.u32 2147483647, %v788
    %vm799 = vcmp.eq.f32.partialorder %v798, 8.507059e+37
    %v800 = vand.u32 %v788, 2147483648
    %v801 = vor.u32 1.1754944e-38, %v800
    %v802 = vsel %vm799, %v801, %v797
    %v803 = vmul.f32 %v778, %v802
    %v804 = vmin.f32 %v803, 1.0
    %v805 = vmax.f32 %v804, -1.0
    %v806 = vadd.f32 %v805, 1.0
    %v807 = vmul.f32 %v764, %v806
    %s808 = scalar_lea.vmem [#allocation5], 384
    %v809 = vld [vmem:[%s808] sm:$0xf]
    %v810 = vld [vmem:[%s808 + $0x4] sm:$0xf]
    %v811 = vld [vmem:[%s808 + $0x8] sm:$0xf]
    %v812 = vld [vmem:[%s808 + $0xc] sm:$0xf]
    %v813 = vld [vmem:[%s808 + $0x10] sm:$0xf]
    %v814 = vld [vmem:[%s808 + $0x14] sm:$0xf]
    %v815 = vld [vmem:[%s808 + $0x18] sm:$0xf]
    %v816 = vld [vmem:[%s808 + $0x1c] sm:$0xf]
    %v817 = vld [vmem:[%s808 + $0x20] sm:$0xf]
    %v818 = vld [vmem:[%s808 + $0x24] sm:$0xf]
    %v819 = vld [vmem:[%s808 + $0x28] sm:$0xf]
    %v820 = vld [vmem:[%s808 + $0x2c] sm:$0xf]
    %v821 = vld [vmem:[%s808 + $0x30] sm:$0xf]
    %v822 = vld [vmem:[%s808 + $0x34] sm:$0xf]
    %v823 = vld [vmem:[%s808 + $0x38] sm:$0xf]
    %v824 = vld [vmem:[%s808 + $0x3c] sm:$0xf]
    %v825 = vld [vmem:[#allocation7 + $0x6] sm:$0x1]
    %v826 = vpack.c.bf16 %v807, %v807
    %v827 = vperm.slane %v825, 0
    %v844 = vunpack.c.l.b16 %v809
    %v845 = vunpack.c.l.b16 %v810
    %v846 = vunpack.c.l.b16 %v811
    %v847 = vunpack.c.l.b16 %v812
    %v848 = vunpack.c.l.b16 %v813
    %v849 = vunpack.c.l.b16 %v814
    %v850 = vunpack.c.l.b16 %v815
    %v851 = vunpack.c.l.b16 %v816
    %v852 = vunpack.c.l.b16 %v817
    %v853 = vunpack.c.l.b16 %v818
    %v854 = vunpack.c.l.b16 %v819
    %v855 = vunpack.c.l.b16 %v820
    %v856 = vunpack.c.l.b16 %v821
    %v857 = vunpack.c.l.b16 %v822
    %v858 = vunpack.c.l.b16 %v823
    %v859 = vunpack.c.l.b16 %v824
    %v860 = vpack.c.b16 %v845, %v844
    %v861 = vpack.c.b16 %v847, %v846
    %v862 = vpack.c.b16 %v849, %v848
    %v863 = vpack.c.b16 %v851, %v850
    %v864 = vpack.c.b16 %v853, %v852
    %v865 = vpack.c.b16 %v855, %v854
    %v866 = vpack.c.b16 %v857, %v856
    %v867 = vpack.c.b16 %v859, %v858
    %876 = vmatpush.bf16.msra.mxu0 %v867
    %877 = vmatpush.bf16.msra.mxu0 %v866
    %878 = vmatpush.bf16.msra.mxu0 %v865
    %879 = vmatpush.bf16.msra.mxu0 %v864
    %880 = vmatpush.bf16.msra.mxu0 %v863
    %881 = vmatpush.bf16.msra.mxu0 %v862
    %882 = vmatpush.bf16.msra.mxu0 %v861
    %883 = vmatpush.bf16.msra.mxu0 %v860
    %884 = vmatmul.bf16.gmra.mxu0 %v826
    %v885 = vpop.f32.mrf.mxu0
    %v886 = vadd.f32 %v827, %v885
    %v887 = vpop.f32.mrf.mxu0
    %888 = vdwg.mxu0
    %889 = vst [vmem:[#allocation8] sm:$0xff] %v886
    // Predicated region
    $region26: #{tpu_custom_call.1} parent=1 // pred_check
      _
    $region27: #{tpu_custom_call.1} parent=1 // pred_check_branch
      %891 = sbr.rel (0) target = $region29
    $region28: #{tpu_custom_call.1} parent=1 // pred_region
      %893 = vsyncadd [#allocation4], 0
      %s895 = sshll.u32 [#allocation8], 4
      %s896 = int_to_ptr.vmem [resolvable:$true] %s895
      %s897 = sshll.u32 %s3, 4
      %s898 = int_to_ptr.hbm [resolvable:$true] %s897
      %900 = dma.vmem_to_hbm [thread:$0]  %s896, 128, %s898, [#allocation4]
    $region29: #{tpu_custom_call.1} parent=1 // pred_fallthru
      _
    // Predicated region
    $region30: #{tpu_custom_call.1} parent=1 // pred_check
      _
    $region31: #{tpu_custom_call.1} parent=1 // pred_check_branch
      %902 = sbr.rel (0) target = $region33
    $region32: #{tpu_custom_call.1} parent=1 // pred_region
      %904 = dma.done [#allocation4], 128
    $region33: #{tpu_custom_call.1} parent=1 // pred_fallthru
      _
    %905 = vsyncpa [#allocation3], 1
    %906 = vsyncpa [#allocation6], 1
    %907 = vsyncpa [#allocation4], 1

</llo_original>
